<compile_context>
chip_gen: v6e
topology: v6e:2x2x1
jax: 0.10.0
libtpu: 0.0.40
codegen_flags: <defaults>
</compile_context>

<pallas_src>
import functools

import jax
import jax.numpy as jnp
from jax import lax
from jax.experimental import pallas as pl
from jax.experimental.pallas import tpu as pltpu


def _lstm_recurrent_kernel(p_ref, wh_ref, h0_ref, c0_ref,     # inputs
                           y_ref, cn_ref,                      # outputs
                           h_scr, c_scr,                       # scratch
                           *, h_dim, t_blk, t_total, mask_pad, mxu_dtype):
    """Runs t_blk timesteps of the LSTM recurrence for one batch block.

    Gate layout along the 4H axis is (i, f, o, g) — permuted in the wrapper.
    """
    t_id = pl.program_id(1)
    H = h_dim

    # (Re)load the initial state at the start of every batch-block's time sweep.
    @pl.when(t_id == 0)
    def _():
        h_scr[...] = h0_ref[...].astype(jnp.float32)
        c_scr[...] = c0_ref[...].astype(jnp.float32)

    wh = wh_ref[...]                                   # (H, 4H) resident recurrent weight

    def step(i, carry):
        h_prev, c_prev = carry                         # fp32 (B_blk, H)
        p_t = p_ref[i]                                 # (B_blk, 4H): precomputed x@W_ih^T + bias

        # Single MXU push per step (input projection already folded into p_t).
        gates = jnp.dot(h_prev.astype(mxu_dtype), wh,
                        preferred_element_type=jnp.float32) + p_t

        # TODO(synk): for production sizes pick H as a multiple of 128 so these gate
        # slices are lane-aligned (pure VPU/EUP, no XLU shuffles / masked stores).
        sig = jax.nn.sigmoid(gates[:, :3 * H])         # one contiguous EUP pass (i,f,o)
        i_g = sig[:, 0 * H:1 * H]
        f_g = sig[:, 1 * H:2 * H]
        o_g = sig[:, 2 * H:3 * H]
        g_g = jnp.tanh(gates[:, 3 * H:4 * H])

        c_new = f_g * c_prev + i_g * g_g
        h_new = o_g * jnp.tanh(c_new)

        if mask_pad:
            # Mask steps past the true sequence length (time axis was padded to t_blk).
            valid = (t_id * t_blk + i) < t_total
            h_new = jnp.where(valid, h_new, h_prev)
            c_new = jnp.where(valid, c_new, c_prev)

        y_ref[i] = h_new.astype(y_ref.dtype)
        return h_new, c_new

    h_fin, c_fin = lax.fori_loop(0, t_blk, step, (h_scr[...], c_scr[...]),
                                 unroll=True)
    h_scr[...] = h_fin
    c_scr[...] = c_fin

    @pl.when(t_id == pl.num_programs(1) - 1)
    def _():
        cn_ref[...] = c_fin.astype(cn_ref.dtype)


def _permute_gates_ifog(mat_4h_last):
    """Permute the trailing 4H axis from torch order (i,f,g,o) to (i,f,o,g)."""
    H4 = mat_4h_last.shape[-1]
    H = H4 // 4
    return jnp.concatenate(
        [mat_4h_last[..., :2 * H],             # i, f
         mat_4h_last[..., 3 * H:4 * H],        # o
         mat_4h_last[..., 2 * H:3 * H]],       # g
        axis=-1)


def lstm_pallas(vec, hidden, params, *, t_blk=8, b_blk=None,
                mxu_dtype=jnp.float32):
    """vec: (T, B, D_in); hidden: (h0, c0) each (1, B, H); params: PyTorch LSTM weights."""
    w_ih, w_hh, b_ih, b_hh = params                    # (4H, D), (4H, H), (4H,), (4H,)
    T, B, D = vec.shape
    H = w_hh.shape[1]
    h0, c0 = hidden
    h0 = h0[0].astype(jnp.float32)                     # (B, H)
    c0 = c0[0].astype(jnp.float32)

    # ---- Hoisted input projection: one big MXU-saturating GEMM over all timesteps ----
    # Gate columns permuted to (i, f, o, g) so the kernel's activations are 2 slabs.
    wi = _permute_gates_ifog(w_ih.T.astype(jnp.float32))         # (D, 4H)
    bias = _permute_gates_ifog((b_ih + b_hh).astype(jnp.float32))  # (4H,)
    p = jnp.einsum("tbd,dg->tbg", vec.astype(jnp.float32), wi,
                   preferred_element_type=jnp.float32) + bias      # (T, B, 4H)

    # ---- Tiling choices ----
    t_blk = max(1, min(t_blk, T))
    t_pad = pl.cdiv(T, t_blk) * t_blk
    if t_pad != T:
        p = jnp.pad(p, ((0, t_pad - T), (0, 0), (0, 0)))
    n_t = t_pad // t_blk
    mask_pad = (t_pad != T)

    # Batch blocking (parallel axis, e.g. across v7x's two TensorCores). Only split
    # when the block keeps the sublane (second-to-last) dim 8-aligned.
    if b_blk is None or b_blk >= B or B % b_blk != 0 or b_blk % 8 != 0:
        b_blk = B
    n_b = B // b_blk

    wh = _permute_gates_ifog(w_hh.T.astype(mxu_dtype))  # (H, 4H) only VMEM-resident weight

    grid_spec = pltpu.PrefetchScalarGridSpec(
        num_scalar_prefetch=0,
        grid=(n_b, n_t),
        in_specs=[
            pl.BlockSpec((t_blk, b_blk, 4 * H), lambda b, t: (t, b, 0)),   # P block
            pl.BlockSpec((H, 4 * H), lambda b, t: (0, 0)),                 # W_hh^T
            pl.BlockSpec((b_blk, H), lambda b, t: (b, 0)),                 # h0
            pl.BlockSpec((b_blk, H), lambda b, t: (b, 0)),                 # c0
        ],
        out_specs=[
            pl.BlockSpec((t_blk, b_blk, H), lambda b, t: (t, b, 0)),       # y block
            pl.BlockSpec((b_blk, H), lambda b, t: (b, 0)),                 # c_n
        ],
        scratch_shapes=[
            pltpu.VMEM((b_blk, H), jnp.float32),       # h state (carried across time blocks)
            pltpu.VMEM((b_blk, H), jnp.float32),       # c state
        ],
    )

    # Advisory cost estimate for the recurrent kernel (matmul + gate math).
    flops = 2 * t_pad * B * H * (4 * H) + 12 * t_pad * B * H
    transcendentals = 5 * t_pad * B * H
    bytes_accessed = 4 * (p.size + t_pad * B * H + wh.size + 4 * B * H)
    cost = pl.CostEstimate(flops=int(flops),
                           transcendentals=int(transcendentals),
                           bytes_accessed=int(bytes_accessed))

    # Explicit VMEM budget: double-buffered P/y blocks + resident W_hh^T + state + slack.
    w_bytes = H * 4 * H * jnp.dtype(mxu_dtype).itemsize
    vmem_bytes = (2 * (t_blk * b_blk * 4 * H * 4 + t_blk * b_blk * H * 4)
                  + w_bytes + 6 * b_blk * H * 4 + (4 << 20))
    vmem_limit = int(min(max(vmem_bytes, 16 << 20), 128 << 20))

    kernel = functools.partial(_lstm_recurrent_kernel, h_dim=H, t_blk=t_blk,
                               t_total=T, mask_pad=mask_pad, mxu_dtype=mxu_dtype)

    y, c_n = pl.pallas_call(
        kernel,
        out_shape=(jax.ShapeDtypeStruct((t_pad, B, H), vec.dtype),
                   jax.ShapeDtypeStruct((B, H), vec.dtype)),
        grid_spec=grid_spec,
        compiler_params=pltpu.CompilerParams(
            dimension_semantics=("parallel", "arbitrary"),
            vmem_limit_bytes=vmem_limit),
        cost_estimate=cost,
    )(p, wh, h0, c0)

    y = y[:T]
    h_n = y[T - 1]                                     # h_n == last output; no extra DMA needed
    return y, (h_n[None], c_n[None])


def lstm_reference(vec, hidden, params):
    """Pure-JAX reference matching torch.nn.LSTM semantics (gate order i,f,g,o)."""
    w_ih, w_hh, b_ih, b_hh = params
    H = w_hh.shape[1]
    h, c = hidden[0][0], hidden[1][0]

    def step(carry, x_t):
        h, c = carry
        gates = x_t @ w_ih.T + h @ w_hh.T + b_ih + b_hh
        i = jax.nn.sigmoid(gates[:, 0 * H:1 * H])
        f = jax.nn.sigmoid(gates[:, 1 * H:2 * H])
        g = jnp.tanh(gates[:, 2 * H:3 * H])
        o = jax.nn.sigmoid(gates[:, 3 * H:4 * H])
        c = f * c + i * g
        h = o * jnp.tanh(c)
        return (h, c), h

    (h, c), ys = jax.lax.scan(step, (h, c), vec)
    return ys, (h[None], c[None])


if __name__ == "__main__":
    T, B, D_IN, H = 8, 4, 16, 32

    key = jax.random.PRNGKey(0)
    k_x, k_h, k_c, k_wi, k_wh, k_bi, k_bh = jax.random.split(key, 7)

    # Deterministic parameter init (PyTorch-style uniform(-1/sqrt(H), 1/sqrt(H))).
    bound = 1.0 / jnp.sqrt(jnp.float32(H))
    w_ih = jax.random.uniform(k_wi, (4 * H, D_IN), jnp.float32, -bound, bound)
    w_hh = jax.random.uniform(k_wh, (4 * H, H), jnp.float32, -bound, bound)
    b_ih = jax.random.uniform(k_bi, (4 * H,), jnp.float32, -bound, bound)
    b_hh = jax.random.uniform(k_bh, (4 * H,), jnp.float32, -bound, bound)
    params = (w_ih, w_hh, b_ih, b_hh)

    vec = jax.random.normal(k_x, (T, B, D_IN), jnp.float32)
    h0 = jax.random.normal(k_h, (1, B, H), jnp.float32)
    c0 = jax.random.normal(k_c, (1, B, H), jnp.float32)

    lstm_fn = jax.jit(functools.partial(lstm_pallas, t_blk=4))

    # --- Case 1: T divisible by the time block (exercises scratch carry across blocks) ---
    y, (h_n, c_n) = lstm_fn(vec, (h0, c0), params)
    jax.block_until_ready((y, h_n, c_n))

    y_ref, (h_ref, c_ref) = lstm_reference(vec, (h0, c0), params)
    assert y.shape == (T, B, H) and h_n.shape == (1, B, H) and c_n.shape == (1, B, H)
    assert jnp.allclose(y, y_ref, rtol=1e-5, atol=1e-5)
    assert jnp.allclose(h_n, h_ref, rtol=1e-5, atol=1e-5)
    assert jnp.allclose(c_n, c_ref, rtol=1e-5, atol=1e-5)

    # --- Case 2: T NOT divisible by the time block (exercises in-kernel padding mask) ---
    T2 = 5
    vec2 = vec[:T2]
    y2, (h_n2, c_n2) = lstm_fn(vec2, (h0, c0), params)
    jax.block_until_ready((y2, h_n2, c_n2))

    y2_ref, (h2_ref, c2_ref) = lstm_reference(vec2, (h0, c0), params)
    assert y2.shape == (T2, B, H)
    assert jnp.allclose(y2, y2_ref, rtol=1e-5, atol=1e-5)
    assert jnp.allclose(h_n2, h2_ref, rtol=1e-5, atol=1e-5)
    assert jnp.allclose(c_n2, c2_ref, rtol=1e-5, atol=1e-5)

    print("KERNEL_OK")
</pallas_src>

<mosaic_0001>
module attributes {stable_mosaic.version = 11 : i64} {
  func.func @_lstm_recurrent_kernel(%arg0: i32, %arg1: i32, %arg2: memref<4x4x128xf32, #tpu.memory_space<vmem>>, %arg3: memref<32x128xf32, #tpu.memory_space<vmem>>, %arg4: memref<4x32xf32, #tpu.memory_space<vmem>>, %arg5: memref<4x32xf32, #tpu.memory_space<vmem>>, %arg6: memref<4x4x32xf32, #tpu.memory_space<vmem>>, %arg7: memref<4x32xf32, #tpu.memory_space<vmem>>, %arg8: memref<4x32xf32, #tpu.memory_space<vmem>>, %arg9: memref<4x32xf32, #tpu.memory_space<vmem>>) attributes {dimension_semantics = [#tpu.dimension_semantics<parallel>, #tpu.dimension_semantics<arbitrary>], iteration_bounds = array<i64: 1, 2>, scalar_prefetch = 0 : i64, scratch_operands = 2 : i64, tpu.core_type = #tpu.core_type<tc>, window_params = [{transform_indices = @transform_0, window_bounds = array<i64: 4, 4, 128>}, {pipeline_mode = #tpu.pipeline_mode<synchronous>, transform_indices = @transform_1, window_bounds = array<i64: 32, 128>}, {transform_indices = @transform_2, window_bounds = array<i64: 4, 32>}, {transform_indices = @transform_3, window_bounds = array<i64: 4, 32>}, {transform_indices = @transform_4, window_bounds = array<i64: 4, 4, 32>}, {transform_indices = @transform_5, window_bounds = array<i64: 4, 32>}]} {
    %c0_i32 = arith.constant 0 : i32
    %0 = arith.cmpi eq, %arg1, %c0_i32 : i32
    %1 = arith.extui %0 : i1 to i32
    %c0_i32_0 = arith.constant 0 : i32
    %2 = arith.cmpi ne, %1, %c0_i32_0 : i32
    scf.if %2 {
      %c0_36 = arith.constant 0 : index
      %c0_37 = arith.constant 0 : index
      %111 = vector.load %arg4[%c0_36, %c0_37] : memref<4x32xf32, #tpu.memory_space<vmem>>, vector<4x32xf32>
      %c0_38 = arith.constant 0 : index
      %c0_39 = arith.constant 0 : index
      %112 = vector.load %arg8[%c0_38, %c0_39] : memref<4x32xf32, #tpu.memory_space<vmem>>, vector<4x32xf32>
      tpu.vector_store %arg8[%c0_38, %c0_39], %111 {strides = array<i32>} : memref<4x32xf32, #tpu.memory_space<vmem>>, vector<4x32xf32>,
      %c0_40 = arith.constant 0 : index
      %c0_41 = arith.constant 0 : index
      %113 = vector.load %arg5[%c0_40, %c0_41] : memref<4x32xf32, #tpu.memory_space<vmem>>, vector<4x32xf32>
      %c0_42 = arith.constant 0 : index
      %c0_43 = arith.constant 0 : index
      %114 = vector.load %arg9[%c0_42, %c0_43] : memref<4x32xf32, #tpu.memory_space<vmem>>, vector<4x32xf32>
      tpu.vector_store %arg9[%c0_42, %c0_43], %113 {strides = array<i32>} : memref<4x32xf32, #tpu.memory_space<vmem>>, vector<4x32xf32>,
    } else {
    }
    %c0 = arith.constant 0 : index
    %c0_1 = arith.constant 0 : index
    %3 = vector.load %arg3[%c0, %c0_1] : memref<32x128xf32, #tpu.memory_space<vmem>>, vector<32x128xf32>
    %c0_2 = arith.constant 0 : index
    %c0_3 = arith.constant 0 : index
    %4 = vector.load %arg8[%c0_2, %c0_3] : memref<4x32xf32, #tpu.memory_space<vmem>>, vector<4x32xf32>
    %c0_4 = arith.constant 0 : index
    %c0_5 = arith.constant 0 : index
    %5 = vector.load %arg9[%c0_4, %c0_5] : memref<4x32xf32, #tpu.memory_space<vmem>>, vector<4x32xf32>
    %c0_i32_6 = arith.constant 0 : i32
    %6 = arith.index_cast %c0_i32_6 : i32 to index
    %c0_7 = arith.constant 0 : index
    %c0_8 = arith.constant 0 : index
    %7 = vector.load %arg2[%6, %c0_7, %c0_8] : memref<4x4x128xf32, #tpu.memory_space<vmem>>, vector<1x4x128xf32>
    %8 = vector.shape_cast %7 : vector<1x4x128xf32> to vector<4x128xf32>
    %cst = arith.constant dense<0.000000e+00> : vector<4x128xf32>
    %9 = tpu.matmul %4, %3, %cst {dimension_numbers = #tpu.dot_dimension_numbers<[1], [0], [0], [1], [0, 0, 1, 1], [], []>} : vector<4x32xf32>, vector<32x128xf32>, vector<4x128xf32> -> vector<4x128xf32>
    %10 = arith.addf %9, %8 : vector<4x128xf32>
    %11 = vector.extract_strided_slice %10 {offsets = [0, 0], sizes = [4, 96], strides = [1, 1]} : vector<4x128xf32> to vector<4x96xf32>
    %12 = arith.negf %11 : vector<4x96xf32>
    %13 = math.exp %12 : vector<4x96xf32>
    %cst_9 = arith.constant 1.000000e+00 : f32
    %14 = vector.broadcast %cst_9 : f32 to vector<4x96xf32>
    %15 = arith.addf %14, %13 : vector<4x96xf32>
    %16 = arith.divf %14, %15 : vector<4x96xf32>
    %17 = vector.extract_strided_slice %16 {offsets = [0, 0], sizes = [4, 32], strides = [1, 1]} : vector<4x96xf32> to vector<4x32xf32>
    %18 = vector.extract_strided_slice %16 {offsets = [0, 32], sizes = [4, 32], strides = [1, 1]} : vector<4x96xf32> to vector<4x32xf32>
    %19 = vector.extract_strided_slice %16 {offsets = [0, 64], sizes = [4, 32], strides = [1, 1]} : vector<4x96xf32> to vector<4x32xf32>
    %20 = vector.extract_strided_slice %10 {offsets = [0, 96], sizes = [4, 32], strides = [1, 1]} : vector<4x128xf32> to vector<4x32xf32>
    %21 = math.tanh %20 : vector<4x32xf32>
    %22 = arith.mulf %18, %5 : vector<4x32xf32>
    %23 = arith.mulf %17, %21 : vector<4x32xf32>
    %24 = arith.addf %22, %23 : vector<4x32xf32>
    %25 = math.tanh %24 : vector<4x32xf32>
    %26 = arith.mulf %19, %25 : vector<4x32xf32>
    %27 = arith.index_cast %c0_i32_6 : i32 to index
    %c0_10 = arith.constant 0 : index
    %c0_11 = arith.constant 0 : index
    %28 = vector.load %arg6[%27, %c0_10, %c0_11] : memref<4x4x32xf32, #tpu.memory_space<vmem>>, vector<1x4x32xf32>
    %29 = vector.shape_cast %28 : vector<1x4x32xf32> to vector<4x32xf32>
    %30 = vector.shape_cast %26 : vector<4x32xf32> to vector<1x4x32xf32>
    tpu.vector_store %arg6[%27, %c0_10, %c0_11], %30 {strides = array<i32>} : memref<4x4x32xf32, #tpu.memory_space<vmem>>, vector<1x4x32xf32>,
    %c1_i32 = arith.constant 1 : i32
    %31 = arith.index_cast %c1_i32 : i32 to index
    %c0_12 = arith.constant 0 : index
    %c0_13 = arith.constant 0 : index
    %32 = vector.load %arg2[%31, %c0_12, %c0_13] : memref<4x4x128xf32, #tpu.memory_space<vmem>>, vector<1x4x128xf32>
    %33 = vector.shape_cast %32 : vector<1x4x128xf32> to vector<4x128xf32>
    %cst_14 = arith.constant dense<0.000000e+00> : vector<4x128xf32>
    %34 = tpu.matmul %26, %3, %cst_14 {dimension_numbers = #tpu.dot_dimension_numbers<[1], [0], [0], [1], [0, 0, 1, 1], [], []>} : vector<4x32xf32>, vector<32x128xf32>, vector<4x128xf32> -> vector<4x128xf32>
    %35 = arith.addf %34, %33 : vector<4x128xf32>
    %36 = vector.extract_strided_slice %35 {offsets = [0, 0], sizes = [4, 96], strides = [1, 1]} : vector<4x128xf32> to vector<4x96xf32>
    %37 = arith.negf %36 : vector<4x96xf32>
    %38 = math.exp %37 : vector<4x96xf32>
    %cst_15 = arith.constant 1.000000e+00 : f32
    %39 = vector.broadcast %cst_15 : f32 to vector<4x96xf32>
    %40 = arith.addf %39, %38 : vector<4x96xf32>
    %41 = arith.divf %39, %40 : vector<4x96xf32>
    %42 = vector.extract_strided_slice %41 {offsets = [0, 0], sizes = [4, 32], strides = [1, 1]} : vector<4x96xf32> to vector<4x32xf32>
    %43 = vector.extract_strided_slice %41 {offsets = [0, 32], sizes = [4, 32], strides = [1, 1]} : vector<4x96xf32> to vector<4x32xf32>
    %44 = vector.extract_strided_slice %41 {offsets = [0, 64], sizes = [4, 32], strides = [1, 1]} : vector<4x96xf32> to vector<4x32xf32>
    %45 = vector.extract_strided_slice %35 {offsets = [0, 96], sizes = [4, 32], strides = [1, 1]} : vector<4x128xf32> to vector<4x32xf32>
    %46 = math.tanh %45 : vector<4x32xf32>
    %47 = arith.mulf %43, %24 : vector<4x32xf32>
    %48 = arith.mulf %42, %46 : vector<4x32xf32>
    %49 = arith.addf %47, %48 : vector<4x32xf32>
    %50 = math.tanh %49 : vector<4x32xf32>
    %51 = arith.mulf %44, %50 : vector<4x32xf32>
    %52 = arith.index_cast %c1_i32 : i32 to index
    %c0_16 = arith.constant 0 : index
    %c0_17 = arith.constant 0 : index
    %53 = vector.load %arg6[%52, %c0_16, %c0_17] : memref<4x4x32xf32, #tpu.memory_space<vmem>>, vector<1x4x32xf32>
    %54 = vector.shape_cast %53 : vector<1x4x32xf32> to vector<4x32xf32>
    %55 = vector.shape_cast %51 : vector<4x32xf32> to vector<1x4x32xf32>
    tpu.vector_store %arg6[%52, %c0_16, %c0_17], %55 {strides = array<i32>} : memref<4x4x32xf32, #tpu.memory_space<vmem>>, vector<1x4x32xf32>,
    %c2_i32 = arith.constant 2 : i32
    %56 = arith.index_cast %c2_i32 : i32 to index
    %c0_18 = arith.constant 0 : index
    %c0_19 = arith.constant 0 : index
    %57 = vector.load %arg2[%56, %c0_18, %c0_19] : memref<4x4x128xf32, #tpu.memory_space<vmem>>, vector<1x4x128xf32>
    %58 = vector.shape_cast %57 : vector<1x4x128xf32> to vector<4x128xf32>
    %cst_20 = arith.constant dense<0.000000e+00> : vector<4x128xf32>
    %59 = tpu.matmul %51, %3, %cst_20 {dimension_numbers = #tpu.dot_dimension_numbers<[1], [0], [0], [1], [0, 0, 1, 1], [], []>} : vector<4x32xf32>, vector<32x128xf32>, vector<4x128xf32> -> vector<4x128xf32>
    %60 = arith.addf %59, %58 : vector<4x128xf32>
    %61 = vector.extract_strided_slice %60 {offsets = [0, 0], sizes = [4, 96], strides = [1, 1]} : vector<4x128xf32> to vector<4x96xf32>
    %62 = arith.negf %61 : vector<4x96xf32>
    %63 = math.exp %62 : vector<4x96xf32>
    %cst_21 = arith.constant 1.000000e+00 : f32
    %64 = vector.broadcast %cst_21 : f32 to vector<4x96xf32>
    %65 = arith.addf %64, %63 : vector<4x96xf32>
    %66 = arith.divf %64, %65 : vector<4x96xf32>
    %67 = vector.extract_strided_slice %66 {offsets = [0, 0], sizes = [4, 32], strides = [1, 1]} : vector<4x96xf32> to vector<4x32xf32>
    %68 = vector.extract_strided_slice %66 {offsets = [0, 32], sizes = [4, 32], strides = [1, 1]} : vector<4x96xf32> to vector<4x32xf32>
    %69 = vector.extract_strided_slice %66 {offsets = [0, 64], sizes = [4, 32], strides = [1, 1]} : vector<4x96xf32> to vector<4x32xf32>
    %70 = vector.extract_strided_slice %60 {offsets = [0, 96], sizes = [4, 32], strides = [1, 1]} : vector<4x128xf32> to vector<4x32xf32>
    %71 = math.tanh %70 : vector<4x32xf32>
    %72 = arith.mulf %68, %49 : vector<4x32xf32>
    %73 = arith.mulf %67, %71 : vector<4x32xf32>
    %74 = arith.addf %72, %73 : vector<4x32xf32>
    %75 = math.tanh %74 : vector<4x32xf32>
    %76 = arith.mulf %69, %75 : vector<4x32xf32>
    %77 = arith.index_cast %c2_i32 : i32 to index
    %c0_22 = arith.constant 0 : index
    %c0_23 = arith.constant 0 : index
    %78 = vector.load %arg6[%77, %c0_22, %c0_23] : memref<4x4x32xf32, #tpu.memory_space<vmem>>, vector<1x4x32xf32>
    %79 = vector.shape_cast %78 : vector<1x4x32xf32> to vector<4x32xf32>
    %80 = vector.shape_cast %76 : vector<4x32xf32> to vector<1x4x32xf32>
    tpu.vector_store %arg6[%77, %c0_22, %c0_23], %80 {strides = array<i32>} : memref<4x4x32xf32, #tpu.memory_space<vmem>>, vector<1x4x32xf32>,
    %c3_i32 = arith.constant 3 : i32
    %81 = arith.index_cast %c3_i32 : i32 to index
    %c0_24 = arith.constant 0 : index
    %c0_25 = arith.constant 0 : index
    %82 = vector.load %arg2[%81, %c0_24, %c0_25] : memref<4x4x128xf32, #tpu.memory_space<vmem>>, vector<1x4x128xf32>
    %83 = vector.shape_cast %82 : vector<1x4x128xf32> to vector<4x128xf32>
    %cst_26 = arith.constant dense<0.000000e+00> : vector<4x128xf32>
    %84 = tpu.matmul %76, %3, %cst_26 {dimension_numbers = #tpu.dot_dimension_numbers<[1], [0], [0], [1], [0, 0, 1, 1], [], []>} : vector<4x32xf32>, vector<32x128xf32>, vector<4x128xf32> -> vector<4x128xf32>
    %85 = arith.addf %84, %83 : vector<4x128xf32>
    %86 = vector.extract_strided_slice %85 {offsets = [0, 0], sizes = [4, 96], strides = [1, 1]} : vector<4x128xf32> to vector<4x96xf32>
    %87 = arith.negf %86 : vector<4x96xf32>
    %88 = math.exp %87 : vector<4x96xf32>
    %cst_27 = arith.constant 1.000000e+00 : f32
    %89 = vector.broadcast %cst_27 : f32 to vector<4x96xf32>
    %90 = arith.addf %89, %88 : vector<4x96xf32>
    %91 = arith.divf %89, %90 : vector<4x96xf32>
    %92 = vector.extract_strided_slice %91 {offsets = [0, 0], sizes = [4, 32], strides = [1, 1]} : vector<4x96xf32> to vector<4x32xf32>
    %93 = vector.extract_strided_slice %91 {offsets = [0, 32], sizes = [4, 32], strides = [1, 1]} : vector<4x96xf32> to vector<4x32xf32>
    %94 = vector.extract_strided_slice %91 {offsets = [0, 64], sizes = [4, 32], strides = [1, 1]} : vector<4x96xf32> to vector<4x32xf32>
    %95 = vector.extract_strided_slice %85 {offsets = [0, 96], sizes = [4, 32], strides = [1, 1]} : vector<4x128xf32> to vector<4x32xf32>
    %96 = math.tanh %95 : vector<4x32xf32>
    %97 = arith.mulf %93, %74 : vector<4x32xf32>
    %98 = arith.mulf %92, %96 : vector<4x32xf32>
    %99 = arith.addf %97, %98 : vector<4x32xf32>
    %100 = math.tanh %99 : vector<4x32xf32>
    %101 = arith.mulf %94, %100 : vector<4x32xf32>
    %102 = arith.index_cast %c3_i32 : i32 to index
    %c0_28 = arith.constant 0 : index
    %c0_29 = arith.constant 0 : index
    %103 = vector.load %arg6[%102, %c0_28, %c0_29] : memref<4x4x32xf32, #tpu.memory_space<vmem>>, vector<1x4x32xf32>
    %104 = vector.shape_cast %103 : vector<1x4x32xf32> to vector<4x32xf32>
    %105 = vector.shape_cast %101 : vector<4x32xf32> to vector<1x4x32xf32>
    tpu.vector_store %arg6[%102, %c0_28, %c0_29], %105 {strides = array<i32>} : memref<4x4x32xf32, #tpu.memory_space<vmem>>, vector<1x4x32xf32>,
    %c4_i32 = arith.constant 4 : i32
    %c0_30 = arith.constant 0 : index
    %c0_31 = arith.constant 0 : index
    %106 = vector.load %arg8[%c0_30, %c0_31] : memref<4x32xf32, #tpu.memory_space<vmem>>, vector<4x32xf32>
    tpu.vector_store %arg8[%c0_30, %c0_31], %101 {strides = array<i32>} : memref<4x32xf32, #tpu.memory_space<vmem>>, vector<4x32xf32>,
    %c0_32 = arith.constant 0 : index
    %c0_33 = arith.constant 0 : index
    %107 = vector.load %arg9[%c0_32, %c0_33] : memref<4x32xf32, #tpu.memory_space<vmem>>, vector<4x32xf32>
    tpu.vector_store %arg9[%c0_32, %c0_33], %99 {strides = array<i32>} : memref<4x32xf32, #tpu.memory_space<vmem>>, vector<4x32xf32>,
    %c1_i32_34 = arith.constant 1 : i32
    %108 = arith.cmpi eq, %arg1, %c1_i32_34 : i32
    %109 = arith.extui %108 : i1 to i32
    %c0_i32_35 = arith.constant 0 : i32
    %110 = arith.cmpi ne, %109, %c0_i32_35 : i32
    scf.if %110 {
      %c0_36 = arith.constant 0 : index
      %c0_37 = arith.constant 0 : index
      %111 = vector.load %arg7[%c0_36, %c0_37] : memref<4x32xf32, #tpu.memory_space<vmem>>, vector<4x32xf32>
      tpu.vector_store %arg7[%c0_36, %c0_37], %99 {strides = array<i32>} : memref<4x32xf32, #tpu.memory_space<vmem>>, vector<4x32xf32>,
    } else {
    }
    return
  }
  func.func @transform_0(%arg0: i32, %arg1: i32) -> (i32, i32, i32) {
    %c0_i32 = arith.constant 0 : i32
    %c0_i32_0 = arith.constant 0 : i32
    return %arg1, %arg0, %c0_i32 : i32, i32, i32
  }
  func.func @transform_1(%arg0: i32, %arg1: i32) -> (i32, i32) {
    %c0_i32 = arith.constant 0 : i32
    %c0_i32_0 = arith.constant 0 : i32
    %c0_i32_1 = arith.constant 0 : i32
    return %c0_i32, %c0_i32_0 : i32, i32
  }
  func.func @transform_2(%arg0: i32, %arg1: i32) -> (i32, i32) {
    %c0_i32 = arith.constant 0 : i32
    %c0_i32_0 = arith.constant 0 : i32
    return %arg0, %c0_i32 : i32, i32
  }
  func.func @transform_3(%arg0: i32, %arg1: i32) -> (i32, i32) {
    %c0_i32 = arith.constant 0 : i32
    %c0_i32_0 = arith.constant 0 : i32
    return %arg0, %c0_i32 : i32, i32
  }
  func.func @transform_4(%arg0: i32, %arg1: i32) -> (i32, i32, i32) {
    %c0_i32 = arith.constant 0 : i32
    %c0_i32_0 = arith.constant 0 : i32
    return %arg1, %arg0, %c0_i32 : i32, i32, i32
  }
  func.func @transform_5(%arg0: i32, %arg1: i32) -> (i32, i32) {
    %c0_i32 = arith.constant 0 : i32
    %c0_i32_0 = arith.constant 0 : i32
    return %arg0, %c0_i32 : i32, i32
  }
}

</mosaic_0001>

<llo_original>
// kernel: lstm_pallas.1
$region0: #{lstm_pallas.1}
  #allocation0 [shape = 'u32[]', space=smem, size = 0x4, offset = 0x4, fixed_abs, tag = 'smem constant byte address 0x4 - core index']
  #allocation1 [shape = 'u32[144,128]{1,0:T(1,128)}', space=vmem, size = 0x12000, scoped, tag = 'internal scratch']
  #allocation2 [shape = 'f32[4,32]{1,0:T(4,128)}', space=vmem, size = 0x800, scoped, tag = 'scratch operand']
  #allocation3 [shape = 'f32[4,32]{1,0:T(4,128)}', space=vmem, size = 0x800, scoped, tag = 'scratch operand']
  %s0 = inlined_call_operand.vmem [shape: f32[8,4,128], index: 0, kind: input, shape index: {}]
  %s1 = inlined_call_operand.vmem [shape: f32[32,128], index: 1, kind: input, shape index: {}]
  %s2 = inlined_call_operand.vmem [shape: f32[4,32], index: 2, kind: input, shape index: {}]
  %s3 = inlined_call_operand.vmem [shape: f32[4,32], index: 3, kind: input, shape index: {}]
  %s4 = inlined_call_operand.vmem [shape: f32[8,4,32], index: 4, kind: output, shape index: {0}]
  %s5 = inlined_call_operand.hbm [shape: f32[4,32], index: 5, kind: output, shape index: {1}]
  %6 = xla_tuple %s4, %s5
  %s7 = sld [smem:[#allocation0]]
  $region65: #{lstm_pallas.1} parent=0
    _
  %s9 = ssub.s32 1, %s7
  %s10 = scalar_select 0, %s9, %s7
  $region1: #{lstm_pallas.1} parent=0
    #allocation4 [shape = 'u8[2048]{0}', space=vmem, size = 0x800, scoped, tag = 'output window, operand 1, single buffered']
    #allocation5 [shape = 's32[2]{0}', space=sflag, size = 0x8, scoped, tag = 'scoped memory for lstm_pallas.1']
    %11 = vsyncpa [#allocation5], 0
    loop: start=0, step=1, limit=4
    $region2: #{lstm_pallas.1} parent=1 // loop_pre_header
      _
    $region3: #{lstm_pallas.1} parent=1 // loop_header
      %s13 = sphi 0, %s17
      %p14 = scmp.ge.s32.totalorder %s13, 4
      %s20 = sphi 0, %s32
      %s21 = sphi 0, %s28
      %s22 = sphi 0, %s20
      %s23 = sphi 0, %s21
      %s24 = sphi 0, %s22
      %s25 = sphi 0, %s23
      %s37 = sphi 0, %s39
      %s40 = sphi 0, %s37
      %s41 = sphi 0, %s40
      %s57 = sphi 0, %s41
      %s61 = sphi 0, %s61
      %s63 = sphi 0, %s61
      %s64 = sphi 0, %s63
      %s78 = sphi 0, %s64
      %s84 = sphi 0, %s86
      %s87 = sphi 0, %s84
      %s88 = sphi 0, %s87
      %s104 = sphi 0, %s88
      %s110 = sphi 0, %s112
      %s113 = sphi 0, %s110
      %s114 = sphi 0, %s113
      %s130 = sphi 0, %s114
      %s138 = sphi 0, %s140
      %s141 = sphi 0, %s138
      %s142 = sphi 0, %s141
      %s158 = sphi 0, %s142
      %s164 = sphi 0, %s166
      %s167 = sphi 0, %s164
      %s168 = sphi 0, %s167
      %s184 = sphi 0, %s168
    $region4: #{lstm_pallas.1} parent=1 // loop_header_branch
      %16 = sbr.rel (%p14) target = $region8
    $region5: #{lstm_pallas.1} parent=1 // loop_body
      %s18 = ssub.s32 %s13, 1
      %s19 = ssub.s32 %s13, 2
      %s26 = sadd.s32 1, %s21
      %p27 = scmp.ge.s32.totalorder %s26, 2
      %s28 = scalar_select %p27, 0, %s26
      %s29 = sadd.s32 1, %s20
      %s30 = scalar_select %p27, %s29, %s20
      %p31 = scmp.ge.s32.totalorder %s30, 1
      %s32 = scalar_select %p31, 0, %s30
      %s33 = ssub.s32 %s21, %s28
      %s34 = ssub.s32 %s20, %s32
      %s35 = sor.u32 %s33, %s34
      %p36 = scmp.eq.s32.totalorder %s35, 0
      %s38 = sadd.s32 %s37, 1
      %s39 = scalar_select %p36, %s37, %s38
      %p42 = pneg %p36
      %p43 = scmp.eq.s32.totalorder %s13, 1
      %p44 = por %p42, %p43
      %p45 = scmp.ne.s32.totalorder %s37, %s40
      %p46 = scmp.eq.s32.totalorder %s13, 0
      %p47 = por %p45, %p46
      %p48 = scmp.ne.s32.totalorder %s37, %s40
      %p49 = scmp.eq.s32.totalorder %s18, 1
      %p50 = por %p48, %p49
      %p51 = scmp.ne.s32.totalorder %s40, %s41
      %p52 = scmp.eq.s32.totalorder %s18, 0
      %p53 = por %p51, %p52
      %p54 = scmp.ne.s32.totalorder %s40, %s41
      %p55 = scmp.eq.s32.totalorder %s19, 1
      %p56 = por %p54, %p55
      %p58 = scmp.ne.s32.totalorder %s41, %s57
      %p59 = scmp.eq.s32.totalorder %s19, 0
      %p60 = por %p58, %p59
      %s62 = sadd.s32 %s61, 1
      %p65 = scmp.eq.s32.totalorder %s13, 1
      %p66 = scmp.ne.s32.totalorder %s61, %s63
      %p67 = scmp.eq.s32.totalorder %s13, 0
      %p68 = por %p66, %p67
      %p69 = scmp.ne.s32.totalorder %s61, %s63
      %p70 = scmp.eq.s32.totalorder %s18, 1
      %p71 = por %p69, %p70
      %p72 = scmp.ne.s32.totalorder %s63, %s64
      %p73 = scmp.eq.s32.totalorder %s18, 0
      %p74 = por %p72, %p73
      %p75 = scmp.ne.s32.totalorder %s63, %s64
      %p76 = scmp.eq.s32.totalorder %s19, 1
      %p77 = por %p75, %p76
      %p79 = scmp.ne.s32.totalorder %s64, %s78
      %p80 = scmp.eq.s32.totalorder %s19, 0
      %p81 = por %p79, %p80
      %s82 = ssub.s32 %s20, %s32
      %p83 = scmp.eq.s32.totalorder %s82, 0
      %s85 = sadd.s32 %s84, 1
      %s86 = scalar_select %p83, %s84, %s85
      %p89 = pneg %p83
      %p90 = scmp.eq.s32.totalorder %s13, 1
      %p91 = por %p89, %p90
      %p92 = scmp.ne.s32.totalorder %s84, %s87
      %p93 = scmp.eq.s32.totalorder %s13, 0
      %p94 = por %p92, %p93
      %p95 = scmp.ne.s32.totalorder %s84, %s87
      %p96 = scmp.eq.s32.totalorder %s18, 1
      %p97 = por %p95, %p96
      %p98 = scmp.ne.s32.totalorder %s87, %s88
      %p99 = scmp.eq.s32.totalorder %s18, 0
      %p100 = por %p98, %p99
      %p101 = scmp.ne.s32.totalorder %s87, %s88
      %p102 = scmp.eq.s32.totalorder %s19, 1
      %p103 = por %p101, %p102
      %p105 = scmp.ne.s32.totalorder %s88, %s104
      %p106 = scmp.eq.s32.totalorder %s19, 0
      %p107 = por %p105, %p106
      %s108 = ssub.s32 %s20, %s32
      %p109 = scmp.eq.s32.totalorder %s108, 0
      %s111 = sadd.s32 %s110, 1
      %s112 = scalar_select %p109, %s110, %s111
      %p115 = pneg %p109
      %p116 = scmp.eq.s32.totalorder %s13, 1
      %p117 = por %p115, %p116
      %p118 = scmp.ne.s32.totalorder %s110, %s113
      %p119 = scmp.eq.s32.totalorder %s13, 0
      %p120 = por %p118, %p119
      %p121 = scmp.ne.s32.totalorder %s110, %s113
      %p122 = scmp.eq.s32.totalorder %s18, 1
      %p123 = por %p121, %p122
      %p124 = scmp.ne.s32.totalorder %s113, %s114
      %p125 = scmp.eq.s32.totalorder %s18, 0
      %p126 = por %p124, %p125
      %p127 = scmp.ne.s32.totalorder %s113, %s114
      %p128 = scmp.eq.s32.totalorder %s19, 1
      %p129 = por %p127, %p128
      %p131 = scmp.ne.s32.totalorder %s114, %s130
      %p132 = scmp.eq.s32.totalorder %s19, 0
      %p133 = por %p131, %p132
      %s134 = ssub.s32 %s21, %s28
      %s135 = ssub.s32 %s20, %s32
      %s136 = sor.u32 %s134, %s135
      %p137 = scmp.eq.s32.totalorder %s136, 0
      %s139 = sadd.s32 %s138, 1
      %s140 = scalar_select %p137, %s138, %s139
      %p143 = pneg %p137
      %p144 = scmp.eq.s32.totalorder %s13, 1
      %p145 = por %p143, %p144
      %p146 = scmp.ne.s32.totalorder %s138, %s141
      %p147 = scmp.eq.s32.totalorder %s13, 0
      %p148 = por %p146, %p147
      %p149 = scmp.ne.s32.totalorder %s138, %s141
      %p150 = scmp.eq.s32.totalorder %s18, 1
      %p151 = por %p149, %p150
      %p152 = scmp.ne.s32.totalorder %s141, %s142
      %p153 = scmp.eq.s32.totalorder %s18, 0
      %p154 = por %p152, %p153
      %p155 = scmp.ne.s32.totalorder %s141, %s142
      %p156 = scmp.eq.s32.totalorder %s19, 1
      %p157 = por %p155, %p156
      %p159 = scmp.ne.s32.totalorder %s142, %s158
      %p160 = scmp.eq.s32.totalorder %s19, 0
      %p161 = por %p159, %p160
      %s162 = ssub.s32 %s20, %s32
      %p163 = scmp.eq.s32.totalorder %s162, 0
      %s165 = sadd.s32 %s164, 1
      %s166 = scalar_select %p163, %s164, %s165
      %p169 = pneg %p163
      %p170 = scmp.eq.s32.totalorder %s13, 1
      %p171 = por %p169, %p170
      %p172 = scmp.ne.s32.totalorder %s164, %s167
      %p173 = scmp.eq.s32.totalorder %s13, 0
      %p174 = por %p172, %p173
      %p175 = scmp.ne.s32.totalorder %s164, %s167
      %p176 = scmp.eq.s32.totalorder %s18, 1
      %p177 = por %p175, %p176
      %p178 = scmp.ne.s32.totalorder %s167, %s168
      %p179 = scmp.eq.s32.totalorder %s18, 0
      %p180 = por %p178, %p179
      %p181 = scmp.ne.s32.totalorder %s167, %s168
      %p182 = scmp.eq.s32.totalorder %s19, 1
      %p183 = por %p181, %p182
      %p185 = scmp.ne.s32.totalorder %s168, %s184
      %p186 = scmp.eq.s32.totalorder %s19, 0
      %p187 = por %p185, %p186
      %p188 = scmp.le.s32.totalorder 1, %s13
      %p189 = scmp.lt.s32.totalorder %s13, 3
      %p190 = pnand %p188, %p189
      %p191 = pneg %p190
      // Predicated region
      $region9: #{lstm_pallas.1} parent=5 // pred_check
        _
      $region10: #{lstm_pallas.1} parent=5 // pred_check_branch
        %193 = sbr.rel (%p190) target = $region12
      $region11: #{lstm_pallas.1} parent=5 // pred_region
        %s194 = ssub.s32 %s13, 1
        // Predicated region
        $region13: #{lstm_pallas.1} parent=11 // pred_check
          %p195 = pneg %p74
        $region14: #{lstm_pallas.1} parent=11 // pred_check_branch
          %197 = sbr.rel (%p195) target = $region16
        $region15: #{lstm_pallas.1} parent=11 // pred_region
          _
        $region16: #{lstm_pallas.1} parent=11 // pred_fallthru
          _
        // Predicated region
        $region17: #{lstm_pallas.1} parent=11 // pred_check
          %p198 = pneg %p100
        $region18: #{lstm_pallas.1} parent=11 // pred_check_branch
          %200 = sbr.rel (%p198) target = $region20
        $region19: #{lstm_pallas.1} parent=11 // pred_region
          %p201 = scmp.lt.s32.totalorder %s22, 0
          %s202 = scalar_select %p201, %s22, 0
          %s203 = smul.addr %s202, 4
          %s204 = scalar_lea.vmem %s2, %s203
        $region20: #{lstm_pallas.1} parent=11 // pred_fallthru
          _
        // Predicated region
        $region21: #{lstm_pallas.1} parent=11 // pred_check
          %p205 = pneg %p126
        $region22: #{lstm_pallas.1} parent=11 // pred_check_branch
          %207 = sbr.rel (%p205) target = $region24
        $region23: #{lstm_pallas.1} parent=11 // pred_region
          %p208 = scmp.lt.s32.totalorder %s22, 0
          %s209 = scalar_select %p208, %s22, 0
          %s210 = smul.addr %s209, 4
          %s211 = scalar_lea.vmem %s3, %s210
        $region24: #{lstm_pallas.1} parent=11 // pred_fallthru
          _
      $region12: #{lstm_pallas.1} parent=5 // pred_fallthru
        _
      %p212 = scmp.lt.s32.totalorder %s13, 2
      // Predicated region
      $region25: #{lstm_pallas.1} parent=5 // pred_check
        %p213 = pneg %p212
      $region26: #{lstm_pallas.1} parent=5 // pred_check_branch
        %215 = sbr.rel (%p213) target = $region28
      $region27: #{lstm_pallas.1} parent=5 // pred_region
        // Predicated region
        $region29: #{lstm_pallas.1} parent=27 // pred_check
          %p216 = pneg %p47
        $region30: #{lstm_pallas.1} parent=27 // pred_check_branch
          %218 = sbr.rel (%p216) target = $region32
        $region31: #{lstm_pallas.1} parent=27 // pred_region
          %s219 = smul.u32 4, %s21
          %p220 = scmp.lt.s32.totalorder %s219, 7
          %s221 = scalar_select %p220, %s219, 7
          %p222 = scmp.lt.s32.totalorder %s20, 0
          %s223 = scalar_select %p222, %s20, 0
          %s224 = sadd.s32 %s223, %s221
          %s225 = smul.addr %s224, 4
          %s226 = scalar_lea.vmem %s0, %s225
          %s227 = smul.u32 4, %s21
        $region32: #{lstm_pallas.1} parent=27 // pred_fallthru
          _
      $region28: #{lstm_pallas.1} parent=5 // pred_fallthru
        _
      %p228 = scmp.le.s32.totalorder 1, %s13
      %p229 = scmp.lt.s32.totalorder %s13, 3
      %p230 = pnand %p228, %p229
      %p231 = pneg %p230
      // Predicated region
      $region33: #{lstm_pallas.1} parent=5 // pred_check
        _
      $region34: #{lstm_pallas.1} parent=5 // pred_check_branch
        %233 = sbr.rel (%p230) target = $region36
      $region35: #{lstm_pallas.1} parent=5 // pred_region
        %s234 = ssub.s32 %s13, 1
        %s235 = smul.u32 4, %s23
        %p236 = scmp.lt.s32.totalorder %s235, 7
        %s237 = scalar_select %p236, %s235, 7
        %p238 = scmp.lt.s32.totalorder %s22, 0
        %s239 = scalar_select %p238, %s22, 0
        %s240 = sadd.s32 %s239, %s237
        %s241 = smul.addr %s240, 4
        %s242 = scalar_lea.vmem %s0, %s241
        %p243 = pneg %p53
        %p244 = pneg %p50
        %p245 = pneg %p74
        %p246 = pneg %p71
        %p247 = scmp.lt.s32.totalorder %s22, 0
        %s248 = scalar_select %p247, %s22, 0
        %s249 = smul.addr %s248, 4
        %s250 = scalar_lea.vmem %s2, %s249
        %p251 = pneg %p100
        %p252 = pneg %p97
        %p253 = scmp.lt.s32.totalorder %s22, 0
        %s254 = scalar_select %p253, %s22, 0
        %s255 = smul.addr %s254, 4
        %s256 = scalar_lea.vmem %s3, %s255
        %p257 = pneg %p126
        %p258 = pneg %p123
        %p259 = pneg %p154
        %p260 = pneg %p151
        %s261 = smul.u32 4, %s23
        %p262 = scmp.lt.s32.totalorder %s261, 7
        %s263 = scalar_select %p262, %s261, 7
        %p264 = scmp.lt.s32.totalorder %s22, 0
        %s265 = scalar_select %p264, %s22, 0
        %s266 = sadd.s32 %s265, %s263
        %s267 = smul.addr %s266, 4
        %s268 = scalar_lea.vmem %s4, %s267
        %p269 = pneg %p180
        %p270 = pneg %p177
        %s271 = smul.u32 4, %s23
        %p272 = scmp.lt.s32.totalorder %s271, 7
        %s273 = scalar_select %p272, %s271, 7
        %p274 = scmp.lt.s32.totalorder %s22, 0
        %s275 = scalar_select %p274, %s22, 0
        %s276 = sadd.s32 %s275, %s273
        %s277 = smul.addr %s276, 4
        %s278 = scalar_lea.vmem %s0, %s277
        %s279 = smul.u32 4, %s23
        %p280 = scmp.lt.s32.totalorder %s22, 0
        %s281 = scalar_select %p280, %s22, 0
        %s282 = smul.addr %s281, 4
        %s283 = scalar_lea.vmem %s2, %s282
        %p284 = scmp.lt.s32.totalorder %s22, 0
        %s285 = scalar_select %p284, %s22, 0
        %s286 = smul.addr %s285, 4
        %s287 = scalar_lea.vmem %s3, %s286
        %s288 = smul.u32 4, %s23
        %p289 = scmp.lt.s32.totalorder %s288, 7
        %s290 = scalar_select %p289, %s288, 7
        %p291 = scmp.lt.s32.totalorder %s22, 0
        %s292 = scalar_select %p291, %s22, 0
        %s293 = sadd.s32 %s292, %s290
        %s294 = smul.addr %s293, 4
        %s295 = scalar_lea.vmem %s4, %s294
        %s296 = smul.u32 4, %s23
        %p297 = scmp.eq.s32.totalorder %s23, 0
        // Predicated region
        $region37: #{lstm_pallas.1} parent=35 // pred_check
          %p298 = pneg %p297
        $region38: #{lstm_pallas.1} parent=35 // pred_check_branch
          %300 = sbr.rel (%p298) target = $region40
        $region39: #{lstm_pallas.1} parent=35 // pred_region
          %v301 = vld [vmem:[%s283] sm:$0xf]
          %vm302 = vcmask 257024
          %303 = vst.msk [vmem:[#allocation2] sm:$0xf] %vm302, %v301
          %v304 = vld [vmem:[%s287] sm:$0xf]
          %305 = vst.msk [vmem:[#allocation3] sm:$0xf] %vm302, %v304
        $region40: #{lstm_pallas.1} parent=35 // pred_fallthru
          _
        %v306 = vld [vmem:[%s1] sm:$0xff]
        %v307 = vld [vmem:[%s1 + $0x8] sm:$0xff]
        %v308 = vld [vmem:[%s1 + $0x10] sm:$0xff]
        %v309 = vld [vmem:[%s1 + $0x18] sm:$0xff]
        %v310 = vld [vmem:[#allocation2] sm:$0xf]
        %v311 = vld [vmem:[#allocation3] sm:$0xf]
        %v312 = vld [vmem:[%s278] sm:$0xf]
        %vm313 = vcmask 261120
        %v315 = vsel %vm313, %v310, 0
        %317 = vmatprep.subr.mxu0 0.0
        %318 = vmatpush1.msra.mxu0 0.0
        %319 = vmatprep.subr.mxu0 0.0
        %320 = vmatpush1.msra.mxu0 0.0
        %321 = vmatprep.subr.mxu0 0.0
        %322 = vmatpush1.msra.mxu0 0.0
        %323 = vmatprep.subr.mxu0 0.0
        %324 = vmatpush1.msra.mxu0 0.0
        %325 = vmatprep.subr.mxu0 0.0
        %326 = vmatpush1.msra.mxu0 0.0
        %327 = vmatprep.subr.mxu0 0.0
        %328 = vmatpush1.msra.mxu0 0.0
        %329 = vmatprep.subr.mxu0 0.0
        %330 = vmatpush1.msra.mxu0 0.0
        %331 = vmatprep.subr.mxu0 0.0
        %332 = vmatpush1.msra.mxu0 0.0
        %333 = vmatprep.subr.mxu0 0.0
        %334 = vmatpush1.msra.mxu0 0.0
        %335 = vmatprep.subr.mxu0 0.0
        %336 = vmatpush1.msra.mxu0 0.0
        %337 = vmatprep.subr.mxu0 0.0
        %338 = vmatpush1.msra.mxu0 0.0
        %339 = vmatprep.subr.mxu0 0.0
        %340 = vmatpush1.msra.mxu0 0.0
        %341 = vmatprep.subr.mxu0 0.0
        %342 = vmatpush1.msra.mxu0 %v309
        %343 = vmatprep.subr.mxu0 0.0
        %344 = vmatpush1.msra.mxu0 %v308
        %345 = vmatprep.subr.mxu0 0.0
        %346 = vmatpush1.msra.mxu0 %v307
        %347 = vmatprep.subr.mxu0 0.0
        %348 = vmatpush1.msra.mxu0 %v306
        %349 = vmatprep.subr.mxu0 0.0
        %350 = vmatpush2.msra.mxu0 0.0
        %351 = vmatprep.subr.mxu0 0.0
        %352 = vmatpush2.msra.mxu0 0.0
        %353 = vmatprep.subr.mxu0 0.0
        %354 = vmatpush2.msra.mxu0 0.0
        %355 = vmatprep.subr.mxu0 0.0
        %356 = vmatpush2.msra.mxu0 0.0
        %357 = vmatprep.subr.mxu0 0.0
        %358 = vmatpush2.msra.mxu0 0.0
        %359 = vmatprep.subr.mxu0 0.0
        %360 = vmatpush2.msra.mxu0 0.0
        %361 = vmatprep.subr.mxu0 0.0
        %362 = vmatpush2.msra.mxu0 0.0
        %363 = vmatprep.subr.mxu0 0.0
        %364 = vmatpush2.msra.mxu0 0.0
        %365 = vmatprep.subr.mxu0 0.0
        %366 = vmatpush2.msra.mxu0 0.0
        %367 = vmatprep.subr.mxu0 0.0
        %368 = vmatpush2.msra.mxu0 0.0
        %369 = vmatprep.subr.mxu0 0.0
        %370 = vmatpush2.msra.mxu0 0.0
        %371 = vmatprep.subr.mxu0 0.0
        %372 = vmatpush2.msra.mxu0 0.0
        %373 = vmatprep.subr.mxu0 0.0
        %374 = vmatpush2.msra.mxu0 0.0
        %375 = vmatprep.subr.mxu0 0.0
        %376 = vmatpush2.msra.mxu0 0.0
        %377 = vmatprep.subr.mxu0 0.0
        %378 = vmatpush2.msra.mxu0 0.0
        %379 = vmatprep.subr.mxu0 0.0
        %380 = vmatpush2.msra.mxu0 0.0
        %381 = vmatprep.mubr.f32.mxu0 0.0
        %382 = vmatmul.mubr.f32.gmra.mxu0 %v315
        %v383 = vpop.f32.mrf.mxu0
        %v384 = vadd.f32 %v312, %v383
        %v385 = vpop.f32.mrf.mxu0
        %386 = vdwg.mxu0
        %v387 = vxor.u32 %v384, 2147483648
        %v388 = vmul.f32 %v387, 1.442695
        %v389 = vpow.pop %v388
        %v390 = vadd.f32 %v389, 1.0
        %v391 = vrcp.pop %v390
        %v392 = vmul.f32 1.0, %v391
        %v393 = vtanh.pop %v384
        %395 = vrot.lane.b32.xlu0 %v311, 32
        %v396 = vpop.permute.xlu0 %395
        %v398 = vmul.f32 %v392, %v396
        %400 = vrot.lane.b32.xlu0 %v393, 32
        %v401 = vpop.permute.xlu0 %400
        %v403 = vmul.f32 %v392, %v401
        %405 = vrot.lane.b32.xlu0 %v403, 32
        %v406 = vpop.permute.xlu0 %405
        %v408 = vadd.f32 %v398, %v406
        %v409 = vtanh.pop %v408
        %411 = vrot.lane.b32.xlu0 %v409, 32
        %v412 = vpop.permute.xlu0 %411
        %v414 = vmul.f32 %v392, %v412
        %416 = vrot.lane.b32.xlu0 %v414, 64
        %v417 = vpop.permute.xlu0 %416
        %vm419 = vcmask 257024
        %420 = vst.msk [vmem:[%s295] sm:$0xf] %vm419, %v417
        %s421 = scalar_lea.vmem %s278, 4
        %v422 = vld [vmem:[%s421] sm:$0xf]
        %v423 = vsel %vm313, %v417, 0
        %425 = vmatprep.subr.mxu0 0.0
        %426 = vmatpush1.msra.mxu0 0.0
        %427 = vmatprep.subr.mxu0 0.0
        %428 = vmatpush1.msra.mxu0 0.0
        %429 = vmatprep.subr.mxu0 0.0
        %430 = vmatpush1.msra.mxu0 0.0
        %431 = vmatprep.subr.mxu0 0.0
        %432 = vmatpush1.msra.mxu0 0.0
        %433 = vmatprep.subr.mxu0 0.0
        %434 = vmatpush1.msra.mxu0 0.0
        %435 = vmatprep.subr.mxu0 0.0
        %436 = vmatpush1.msra.mxu0 0.0
        %437 = vmatprep.subr.mxu0 0.0
        %438 = vmatpush1.msra.mxu0 0.0
        %439 = vmatprep.subr.mxu0 0.0
        %440 = vmatpush1.msra.mxu0 0.0
        %441 = vmatprep.subr.mxu0 0.0
        %442 = vmatpush1.msra.mxu0 0.0
        %443 = vmatprep.subr.mxu0 0.0
        %444 = vmatpush1.msra.mxu0 0.0
        %445 = vmatprep.subr.mxu0 0.0
        %446 = vmatpush1.msra.mxu0 0.0
        %447 = vmatprep.subr.mxu0 0.0
        %448 = vmatpush1.msra.mxu0 0.0
        %449 = vmatprep.subr.mxu0 0.0
        %450 = vmatpush1.msra.mxu0 %v309
        %451 = vmatprep.subr.mxu0 0.0
        %452 = vmatpush1.msra.mxu0 %v308
        %453 = vmatprep.subr.mxu0 0.0
        %454 = vmatpush1.msra.mxu0 %v307
        %455 = vmatprep.subr.mxu0 0.0
        %456 = vmatpush1.msra.mxu0 %v306
        %457 = vmatprep.subr.mxu0 0.0
        %458 = vmatpush2.msra.mxu0 0.0
        %459 = vmatprep.subr.mxu0 0.0
        %460 = vmatpush2.msra.mxu0 0.0
        %461 = vmatprep.subr.mxu0 0.0
        %462 = vmatpush2.msra.mxu0 0.0
        %463 = vmatprep.subr.mxu0 0.0
        %464 = vmatpush2.msra.mxu0 0.0
        %465 = vmatprep.subr.mxu0 0.0
        %466 = vmatpush2.msra.mxu0 0.0
        %467 = vmatprep.subr.mxu0 0.0
        %468 = vmatpush2.msra.mxu0 0.0
        %469 = vmatprep.subr.mxu0 0.0
        %470 = vmatpush2.msra.mxu0 0.0
        %471 = vmatprep.subr.mxu0 0.0
        %472 = vmatpush2.msra.mxu0 0.0
        %473 = vmatprep.subr.mxu0 0.0
        %474 = vmatpush2.msra.mxu0 0.0
        %475 = vmatprep.subr.mxu0 0.0
        %476 = vmatpush2.msra.mxu0 0.0
        %477 = vmatprep.subr.mxu0 0.0
        %478 = vmatpush2.msra.mxu0 0.0
        %479 = vmatprep.subr.mxu0 0.0
        %480 = vmatpush2.msra.mxu0 0.0
        %481 = vmatprep.subr.mxu0 0.0
        %482 = vmatpush2.msra.mxu0 0.0
        %483 = vmatprep.subr.mxu0 0.0
        %484 = vmatpush2.msra.mxu0 0.0
        %485 = vmatprep.subr.mxu0 0.0
        %486 = vmatpush2.msra.mxu0 0.0
        %487 = vmatprep.subr.mxu0 0.0
        %488 = vmatpush2.msra.mxu0 0.0
        %489 = vmatprep.mubr.f32.mxu0 0.0
        %490 = vmatmul.mubr.f32.gmra.mxu0 %v423
        %v491 = vpop.f32.mrf.mxu0
        %v492 = vadd.f32 %v422, %v491
        %v493 = vpop.f32.mrf.mxu0
        %494 = vdwg.mxu0
        %v495 = vxor.u32 %v492, 2147483648
        %v496 = vmul.f32 %v495, 1.442695
        %v497 = vpow.pop %v496
        %v498 = vadd.f32 %v497, 1.0
        %v499 = vrcp.pop %v498
        %v500 = vmul.f32 1.0, %v499
        %v501 = vtanh.pop %v492
        %v502 = vmul.f32 %v500, %v408
        %504 = vrot.lane.b32.xlu0 %v501, 32
        %v505 = vpop.permute.xlu0 %504
        %v507 = vmul.f32 %v500, %v505
        %509 = vrot.lane.b32.xlu0 %v507, 32
        %v510 = vpop.permute.xlu0 %509
        %v512 = vadd.f32 %v502, %v510
        %v513 = vtanh.pop %v512
        %515 = vrot.lane.b32.xlu0 %v513, 32
        %v516 = vpop.permute.xlu0 %515
        %v518 = vmul.f32 %v500, %v516
        %520 = vrot.lane.b32.xlu0 %v518, 64
        %v521 = vpop.permute.xlu0 %520
        %s523 = scalar_lea.vmem %s295, 4
        %524 = vst.msk [vmem:[%s523] sm:$0xf] %vm419, %v521
        %s525 = scalar_lea.vmem %s278, 8
        %v526 = vld [vmem:[%s525] sm:$0xf]
        %v527 = vsel %vm313, %v521, 0
        %529 = vmatprep.subr.mxu0 0.0
        %530 = vmatpush1.msra.mxu0 0.0
        %531 = vmatprep.subr.mxu0 0.0
        %532 = vmatpush1.msra.mxu0 0.0
        %533 = vmatprep.subr.mxu0 0.0
        %534 = vmatpush1.msra.mxu0 0.0
        %535 = vmatprep.subr.mxu0 0.0
        %536 = vmatpush1.msra.mxu0 0.0
        %537 = vmatprep.subr.mxu0 0.0
        %538 = vmatpush1.msra.mxu0 0.0
        %539 = vmatprep.subr.mxu0 0.0
        %540 = vmatpush1.msra.mxu0 0.0
        %541 = vmatprep.subr.mxu0 0.0
        %542 = vmatpush1.msra.mxu0 0.0
        %543 = vmatprep.subr.mxu0 0.0
        %544 = vmatpush1.msra.mxu0 0.0
        %545 = vmatprep.subr.mxu0 0.0
        %546 = vmatpush1.msra.mxu0 0.0
        %547 = vmatprep.subr.mxu0 0.0
        %548 = vmatpush1.msra.mxu0 0.0
        %549 = vmatprep.subr.mxu0 0.0
        %550 = vmatpush1.msra.mxu0 0.0
        %551 = vmatprep.subr.mxu0 0.0
        %552 = vmatpush1.msra.mxu0 0.0
        %553 = vmatprep.subr.mxu0 0.0
        %554 = vmatpush1.msra.mxu0 %v309
        %555 = vmatprep.subr.mxu0 0.0
        %556 = vmatpush1.msra.mxu0 %v308
        %557 = vmatprep.subr.mxu0 0.0
        %558 = vmatpush1.msra.mxu0 %v307
        %559 = vmatprep.subr.mxu0 0.0
        %560 = vmatpush1.msra.mxu0 %v306
        %561 = vmatprep.subr.mxu0 0.0
        %562 = vmatpush2.msra.mxu0 0.0
        %563 = vmatprep.subr.mxu0 0.0
        %564 = vmatpush2.msra.mxu0 0.0
        %565 = vmatprep.subr.mxu0 0.0
        %566 = vmatpush2.msra.mxu0 0.0
        %567 = vmatprep.subr.mxu0 0.0
        %568 = vmatpush2.msra.mxu0 0.0
        %569 = vmatprep.subr.mxu0 0.0
        %570 = vmatpush2.msra.mxu0 0.0
        %571 = vmatprep.subr.mxu0 0.0
        %572 = vmatpush2.msra.mxu0 0.0
        %573 = vmatprep.subr.mxu0 0.0
        %574 = vmatpush2.msra.mxu0 0.0
        %575 = vmatprep.subr.mxu0 0.0
        %576 = vmatpush2.msra.mxu0 0.0
        %577 = vmatprep.subr.mxu0 0.0
        %578 = vmatpush2.msra.mxu0 0.0
        %579 = vmatprep.subr.mxu0 0.0
        %580 = vmatpush2.msra.mxu0 0.0
        %581 = vmatprep.subr.mxu0 0.0
        %582 = vmatpush2.msra.mxu0 0.0
        %583 = vmatprep.subr.mxu0 0.0
        %584 = vmatpush2.msra.mxu0 0.0
        %585 = vmatprep.subr.mxu0 0.0
        %586 = vmatpush2.msra.mxu0 0.0
        %587 = vmatprep.subr.mxu0 0.0
        %588 = vmatpush2.msra.mxu0 0.0
        %589 = vmatprep.subr.mxu0 0.0
        %590 = vmatpush2.msra.mxu0 0.0
        %591 = vmatprep.subr.mxu0 0.0
        %592 = vmatpush2.msra.mxu0 0.0
        %593 = vmatprep.mubr.f32.mxu0 0.0
        %594 = vmatmul.mubr.f32.gmra.mxu0 %v527
        %v595 = vpop.f32.mrf.mxu0
        %v596 = vadd.f32 %v526, %v595
        %v597 = vpop.f32.mrf.mxu0
        %598 = vdwg.mxu0
        %v599 = vxor.u32 %v596, 2147483648
        %v600 = vmul.f32 %v599, 1.442695
        %v601 = vpow.pop %v600
        %v602 = vadd.f32 %v601, 1.0
        %v603 = vrcp.pop %v602
        %v604 = vmul.f32 1.0, %v603
        %v605 = vtanh.pop %v596
        %v606 = vmul.f32 %v604, %v512
        %608 = vrot.lane.b32.xlu0 %v605, 32
        %v609 = vpop.permute.xlu0 %608
        %v611 = vmul.f32 %v604, %v609
        %613 = vrot.lane.b32.xlu0 %v611, 32
        %v614 = vpop.permute.xlu0 %613
        %v616 = vadd.f32 %v606, %v614
        %v617 = vtanh.pop %v616
        %619 = vrot.lane.b32.xlu0 %v617, 32
        %v620 = vpop.permute.xlu0 %619
        %v622 = vmul.f32 %v604, %v620
        %624 = vrot.lane.b32.xlu0 %v622, 64
        %v625 = vpop.permute.xlu0 %624
        %s627 = scalar_lea.vmem %s295, 8
        %628 = vst.msk [vmem:[%s627] sm:$0xf] %vm419, %v625
        %s629 = scalar_lea.vmem %s278, 12
        %v630 = vld [vmem:[%s629] sm:$0xf]
        %v631 = vsel %vm313, %v625, 0
        %633 = vmatprep.subr.mxu0 0.0
        %634 = vmatpush1.msra.mxu0 0.0
        %635 = vmatprep.subr.mxu0 0.0
        %636 = vmatpush1.msra.mxu0 0.0
        %637 = vmatprep.subr.mxu0 0.0
        %638 = vmatpush1.msra.mxu0 0.0
        %639 = vmatprep.subr.mxu0 0.0
        %640 = vmatpush1.msra.mxu0 0.0
        %641 = vmatprep.subr.mxu0 0.0
        %642 = vmatpush1.msra.mxu0 0.0
        %643 = vmatprep.subr.mxu0 0.0
        %644 = vmatpush1.msra.mxu0 0.0
        %645 = vmatprep.subr.mxu0 0.0
        %646 = vmatpush1.msra.mxu0 0.0
        %647 = vmatprep.subr.mxu0 0.0
        %648 = vmatpush1.msra.mxu0 0.0
        %649 = vmatprep.subr.mxu0 0.0
        %650 = vmatpush1.msra.mxu0 0.0
        %651 = vmatprep.subr.mxu0 0.0
        %652 = vmatpush1.msra.mxu0 0.0
        %653 = vmatprep.subr.mxu0 0.0
        %654 = vmatpush1.msra.mxu0 0.0
        %655 = vmatprep.subr.mxu0 0.0
        %656 = vmatpush1.msra.mxu0 0.0
        %657 = vmatprep.subr.mxu0 0.0
        %658 = vmatpush1.msra.mxu0 %v309
        %659 = vmatprep.subr.mxu0 0.0
        %660 = vmatpush1.msra.mxu0 %v308
        %661 = vmatprep.subr.mxu0 0.0
        %662 = vmatpush1.msra.mxu0 %v307
        %663 = vmatprep.subr.mxu0 0.0
        %664 = vmatpush1.msra.mxu0 %v306
        %665 = vmatprep.subr.mxu0 0.0
        %666 = vmatpush2.msra.mxu0 0.0
        %667 = vmatprep.subr.mxu0 0.0
        %668 = vmatpush2.msra.mxu0 0.0
        %669 = vmatprep.subr.mxu0 0.0
        %670 = vmatpush2.msra.mxu0 0.0
        %671 = vmatprep.subr.mxu0 0.0
        %672 = vmatpush2.msra.mxu0 0.0
        %673 = vmatprep.subr.mxu0 0.0
        %674 = vmatpush2.msra.mxu0 0.0
        %675 = vmatprep.subr.mxu0 0.0
        %676 = vmatpush2.msra.mxu0 0.0
        %677 = vmatprep.subr.mxu0 0.0
        %678 = vmatpush2.msra.mxu0 0.0
        %679 = vmatprep.subr.mxu0 0.0
        %680 = vmatpush2.msra.mxu0 0.0
        %681 = vmatprep.subr.mxu0 0.0
        %682 = vmatpush2.msra.mxu0 0.0
        %683 = vmatprep.subr.mxu0 0.0
        %684 = vmatpush2.msra.mxu0 0.0
        %685 = vmatprep.subr.mxu0 0.0
        %686 = vmatpush2.msra.mxu0 0.0
        %687 = vmatprep.subr.mxu0 0.0
        %688 = vmatpush2.msra.mxu0 0.0
        %689 = vmatprep.subr.mxu0 0.0
        %690 = vmatpush2.msra.mxu0 0.0
        %691 = vmatprep.subr.mxu0 0.0
        %692 = vmatpush2.msra.mxu0 0.0
        %693 = vmatprep.subr.mxu0 0.0
        %694 = vmatpush2.msra.mxu0 0.0
        %695 = vmatprep.subr.mxu0 0.0
        %696 = vmatpush2.msra.mxu0 0.0
        %697 = vmatprep.mubr.f32.mxu0 0.0
        %698 = vmatmul.mubr.f32.gmra.mxu0 %v631
        %v699 = vpop.f32.mrf.mxu0
        %v700 = vadd.f32 %v630, %v699
        %v701 = vpop.f32.mrf.mxu0
        %702 = vdwg.mxu0
        %v703 = vxor.u32 %v700, 2147483648
        %v704 = vmul.f32 %v703, 1.442695
        %v705 = vpow.pop %v704
        %v706 = vadd.f32 %v705, 1.0
        %v707 = vrcp.pop %v706
        %v708 = vmul.f32 1.0, %v707
        %v709 = vtanh.pop %v700
        %v710 = vmul.f32 %v708, %v616
        %712 = vrot.lane.b32.xlu0 %v709, 32
        %v713 = vpop.permute.xlu0 %712
        %v715 = vmul.f32 %v708, %v713
        %717 = vrot.lane.b32.xlu0 %v715, 32
        %v718 = vpop.permute.xlu0 %717
        %v720 = vadd.f32 %v710, %v718
        %v721 = vtanh.pop %v720
        %723 = vrot.lane.b32.xlu0 %v721, 32
        %v724 = vpop.permute.xlu0 %723
        %v726 = vmul.f32 %v708, %v724
        %728 = vrot.lane.b32.xlu0 %v726, 64
        %v729 = vpop.permute.xlu0 %728
        %s731 = scalar_lea.vmem %s295, 12
        %732 = vst.msk [vmem:[%s731] sm:$0xf] %vm419, %v729
        %733 = vst.msk [vmem:[#allocation2] sm:$0xf] %vm419, %v729
        %735 = vrot.lane.b32.xlu0 %v720, 96
        %v736 = vpop.permute.xlu0 %735
        %738 = vst.msk [vmem:[#allocation3] sm:$0xf] %vm419, %v736
        %p739 = scmp.eq.s32.totalorder %s23, 1
        // Predicated region
        $region41: #{lstm_pallas.1} parent=35 // pred_check
          %p740 = pneg %p739
        $region42: #{lstm_pallas.1} parent=35 // pred_check_branch
          %742 = sbr.rel (%p740) target = $region44
        $region43: #{lstm_pallas.1} parent=35 // pred_region
          %743 = vst.msk [vmem:[#allocation4] sm:$0xf] %vm419, %v736
        $region44: #{lstm_pallas.1} parent=35 // pred_fallthru
          _
        %s744 = smul.u32 4, %s23
        %p745 = scmp.lt.s32.totalorder %s744, 7
        %s746 = scalar_select %p745, %s744, 7
        %p747 = scmp.lt.s32.totalorder %s22, 0
        %s748 = scalar_select %p747, %s22, 0
        %s749 = sadd.s32 %s748, %s746
        %s750 = smul.addr %s749, 4
        %s751 = scalar_lea.vmem %s4, %s750
        // Predicated region
        $region45: #{lstm_pallas.1} parent=35 // pred_check
          %p752 = pneg %p151
        $region46: #{lstm_pallas.1} parent=35 // pred_check_branch
          %754 = sbr.rel (%p752) target = $region48
        $region47: #{lstm_pallas.1} parent=35 // pred_region
          %s755 = smul.u32 4, %s23
        $region48: #{lstm_pallas.1} parent=35 // pred_fallthru
          _
        // Predicated region
        $region49: #{lstm_pallas.1} parent=35 // pred_check
          %p756 = pneg %p177
        $region50: #{lstm_pallas.1} parent=35 // pred_check_branch
          %758 = sbr.rel (%p756) target = $region52
        $region51: #{lstm_pallas.1} parent=35 // pred_region
          %s760 = ssub.s32 64, 64
          %761 = vsyncadd [#allocation5], %s760
          %s762 = smul.addr %s22, 64
          %s763 = scalar_lea.hbm %s5, %s762
          %s765 = sshll.u32 [#allocation4], 4
          %s766 = int_to_ptr.vmem [resolvable:$true] %s765
          %768 = dma.vmem_to_hbm [thread:$0]  %s766, 64, %s763, [#allocation5]
        $region52: #{lstm_pallas.1} parent=35 // pred_fallthru
          _
        // Predicated region
        $region53: #{lstm_pallas.1} parent=35 // pred_check
          %p769 = pneg %p177
        $region54: #{lstm_pallas.1} parent=35 // pred_check_branch
          %771 = sbr.rel (%p769) target = $region56
        $region55: #{lstm_pallas.1} parent=35 // pred_region
          %772 = dma.done [#allocation5], 64
        $region56: #{lstm_pallas.1} parent=35 // pred_fallthru
          _
      $region36: #{lstm_pallas.1} parent=5 // pred_fallthru
        _
      %p773 = scmp.le.s32.totalorder 2, %s13
      // Predicated region
      $region57: #{lstm_pallas.1} parent=5 // pred_check
        %p774 = pneg %p773
      $region58: #{lstm_pallas.1} parent=5 // pred_check_branch
        %776 = sbr.rel (%p774) target = $region60
      $region59: #{lstm_pallas.1} parent=5 // pred_region
        %s777 = ssub.s32 %s13, 2
        // Predicated region
        $region61: #{lstm_pallas.1} parent=59 // pred_check
          %p778 = pneg %p157
        $region62: #{lstm_pallas.1} parent=59 // pred_check_branch
          %780 = sbr.rel (%p778) target = $region64
        $region63: #{lstm_pallas.1} parent=59 // pred_region
          %s781 = smul.u32 4, %s25
          %p782 = scmp.lt.s32.totalorder %s781, 7
          %s783 = scalar_select %p782, %s781, 7
          %p784 = scmp.lt.s32.totalorder %s24, 0
          %s785 = scalar_select %p784, %s24, 0
          %s786 = sadd.s32 %s785, %s783
          %s787 = smul.addr %s786, 4
          %s788 = scalar_lea.vmem %s4, %s787
        $region64: #{lstm_pallas.1} parent=59 // pred_fallthru
          _
      $region60: #{lstm_pallas.1} parent=5 // pred_fallthru
        _
    $region6: #{lstm_pallas.1} parent=1 // loop_footer
      %s17 = sadd.s32 1, %s13
    $region7: #{lstm_pallas.1} parent=1 // loop_footer_branch
      %12 = sbr.rel target = $region3
    $region8: #{lstm_pallas.1} parent=1 // loop_exit
      _
    %789 = vsyncpa [#allocation5], 1
    %s790 = scalar_lea.sflag [#allocation5], 1
    %791 = vsyncpa %s790, 1

</llo_original>
